<compile_context>
chip_gen: v7x
topology: tpu7x:2x2x1
jax: 0.10.0
libtpu: 0.0.40
codegen_flags: <defaults>
</compile_context>

<pallas_src>
import functools
import math

import jax
import jax.numpy as jnp
import numpy as np
from jax import lax
from jax.experimental import pallas as pl
from jax.experimental.pallas import tpu as pltpu

EPS_LN = 1e-8        # LayerNorm variance epsilon (module default)
EPS_ATTN = 1e-12     # ProbSparseAttention eps
NEG_FILL = -100000.0


def _row_tile(n):
    # full array if small (block == full dim is always legal), else 512 rows.
    return n if n <= 512 else 512


def _pick_chunk(lq):
    # chunk size for the blocked prefix sum; multiples of 8 that divide Lq.
    for t in (256, 128, 64, 32, 16, 8):
        if lq % t == 0:
            return t
    return lq


# ----------------------- fused LayerNorm -> Linear kernel ----------------------
def _ln_linear_kernel(x_ref, lnw_ref, lnb_ref, w_ref, b_ref, o_ref, *, eps):
    x = x_ref[...]                                      # (TM, D) f32
    mu = jnp.mean(x, axis=-1, keepdims=True)
    xc = x - mu
    var = jnp.mean(xc * xc, axis=-1, keepdims=True)
    y = lnw_ref[...] * (xc * lax.rsqrt(var + eps)) + lnb_ref[...]
    o_ref[...] = (jnp.dot(y.astype(jnp.bfloat16), w_ref[...],
                          preferred_element_type=jnp.float32) + b_ref[...])


def ln_linear_pallas(x2d, ln_w, ln_b, w_t, b, eps=EPS_LN):
    n, din = x2d.shape
    dout = w_t.shape[1]
    tm = _row_tile(n)
    return pl.pallas_call(
        functools.partial(_ln_linear_kernel, eps=eps),
        out_shape=jax.ShapeDtypeStruct((n, dout), jnp.float32),
        grid=(pl.cdiv(n, tm),),
        in_specs=[pl.BlockSpec((tm, din), lambda i: (i, 0)),
                  pl.BlockSpec((1, din), lambda i: (0, 0)),
                  pl.BlockSpec((1, din), lambda i: (0, 0)),
                  pl.BlockSpec((din, dout), lambda i: (0, 0)),   # resident W
                  pl.BlockSpec((1, dout), lambda i: (0, 0))],
        out_specs=pl.BlockSpec((tm, dout), lambda i: (i, 0)),
        compiler_params=pltpu.CompilerParams(dimension_semantics=("parallel",)),
    )(x2d, ln_w.reshape(1, din), ln_b.reshape(1, din),
      w_t.astype(jnp.bfloat16), b.reshape(1, dout))


# ----------------------- fused Linear -> LayerNorm kernel ----------------------
def _linear_ln_kernel(x_ref, w_ref, b_ref, lnw_ref, lnb_ref, o_ref, *, eps):
    x = x_ref[...].astype(jnp.bfloat16)                 # bf16 MXU operands
    y = (jnp.dot(x, w_ref[...], preferred_element_type=jnp.float32)
         + b_ref[...])
    mu = jnp.mean(y, axis=-1, keepdims=True)
    yc = y - mu
    var = jnp.mean(yc * yc, axis=-1, keepdims=True)
    o_ref[...] = lnw_ref[...] * (yc * lax.rsqrt(var + eps)) + lnb_ref[...]


def linear_ln_pallas(x2d, w_t, b, ln_w, ln_b, eps=EPS_LN):
    n, din = x2d.shape
    dout = w_t.shape[1]
    tm = _row_tile(n)
    return pl.pallas_call(
        functools.partial(_linear_ln_kernel, eps=eps),
        out_shape=jax.ShapeDtypeStruct((n, dout), jnp.float32),
        grid=(pl.cdiv(n, tm),),
        in_specs=[pl.BlockSpec((tm, din), lambda i: (i, 0)),
                  pl.BlockSpec((din, dout), lambda i: (0, 0)),   # resident W
                  pl.BlockSpec((1, dout), lambda i: (0, 0)),
                  pl.BlockSpec((1, dout), lambda i: (0, 0)),
                  pl.BlockSpec((1, dout), lambda i: (0, 0))],
        out_specs=pl.BlockSpec((tm, dout), lambda i: (i, 0)),
        compiler_params=pltpu.CompilerParams(dimension_semantics=("parallel",)),
    )(x2d, w_t.astype(jnp.bfloat16), b.reshape(1, dout),
      ln_w.reshape(1, dout), ln_b.reshape(1, dout))


# ------------------------------ plain Linear kernel ----------------------------
def _linear_kernel(x_ref, w_ref, b_ref, o_ref):
    x = x_ref[...].astype(jnp.bfloat16)                 # bf16 MXU operands
    o_ref[...] = (jnp.dot(x, w_ref[...], preferred_element_type=jnp.float32)
                  + b_ref[...])


def linear_pallas(x2d, w_t, b):
    n, din = x2d.shape
    dout = w_t.shape[1]
    tm = _row_tile(n)
    return pl.pallas_call(
        _linear_kernel,
        out_shape=jax.ShapeDtypeStruct((n, dout), jnp.float32),
        grid=(pl.cdiv(n, tm),),
        in_specs=[pl.BlockSpec((tm, din), lambda i: (i, 0)),
                  pl.BlockSpec((din, dout), lambda i: (0, 0)),   # resident W
                  pl.BlockSpec((1, dout), lambda i: (0, 0))],
        out_specs=pl.BlockSpec((tm, dout), lambda i: (i, 0)),
        compiler_params=pltpu.CompilerParams(dimension_semantics=("parallel",)),
    )(x2d, w_t.astype(jnp.bfloat16), b.reshape(1, dout))


# --------------------- ProbSparse attention core kernel ------------------------
def _prob_attn_kernel(idx_ref, limit_ref, q_ref, k_ref, v_ref, pad_ref, o_ref,
                      *, H, u, Lq, Lk, Dh, T, scale):
    nC = Lq // T

    # chunked lower-triangular mask, shared by the padding prefix-count and the
    # per-head blocked cumulative sum of V.
    sub = lax.broadcasted_iota(jnp.int32, (T, T), 0)
    lan = lax.broadcasted_iota(jnp.int32, (T, T), 1)
    tril = lan <= sub
    tril_bf = tril.astype(jnp.bfloat16)

    # 1 / (cumsum(padding) + eps), head-independent, lane-major input row.
    # Cold path (once per batch element) -> exact reciprocal.
    pad_row = pad_ref[0]                                           # (1, Lq) f32
    inv_chunks = []
    pad_carry = jnp.zeros((1, 1), jnp.float32)
    for c in range(nC):
        pad_c = pad_row[:, c * T:(c + 1) * T]                      # (1, T)
        within = jnp.sum(jnp.where(tril, pad_c, 0.0), axis=1, keepdims=True)
        inv_chunks.append(1.0 / (within + pad_carry + EPS_ATTN))   # (T, 1)
        pad_carry = pad_carry + jnp.sum(pad_c, axis=1, keepdims=True)

    key_iota = lax.broadcasted_iota(jnp.int32, (u, Lk), 1)
    row_iota = lax.broadcasted_iota(jnp.int32, (Lq, u), 0)

    for h in range(H):                                  # static unroll, H small
        q = q_ref[0, h]                      # (u, Dh)  bf16 top queries
        k = k_ref[0, h]                      # (Lk, Dh) bf16
        v = v_ref[0, h]                      # (Lk, Dh) bf16
        limit = limit_ref[0, h]              # (u, 1)   int32: idx if unpadded else -1
        idx = idx_ref[0, h]                  # (1, u)   int32: scatter destinations

        # top-query scores against all keys (contract last dims, no transpose)
        scores = lax.dot_general(q, k, (((1,), (1,)), ((), ())),
                                 preferred_element_type=jnp.float32) * scale
        allowed = key_iota <= limit                      # causal + padding mask
        scores = jnp.where(allowed, scores, NEG_FILL)

        # softmax over keys (approx EUP reciprocal on the hot denominator)
        s_max = jnp.max(scores, axis=-1, keepdims=True)
        p = jnp.exp(scores - s_max)
        p = p * pl.reciprocal(jnp.sum(p, axis=-1, keepdims=True), approx=True)
        out_top = jnp.dot(p.astype(jnp.bfloat16), v,
                          preferred_element_type=jnp.float32)       # (u, Dh)

        # baseline: blocked prefix sum of V over query positions, divided by
        # the padding prefix count (running carry between chunks).
        carry = jnp.zeros((1, Dh), jnp.float32)
        avg_chunks = []
        for c in range(nC):
            cs = jnp.dot(tril_bf, v[c * T:(c + 1) * T, :],
                         preferred_element_type=jnp.float32) + carry
            avg_chunks.append(cs * inv_chunks[c])
            if c + 1 < nC:
                carry = cs[T - 1:T, :]
        v_avg = avg_chunks[0] if nC == 1 else jnp.concatenate(avg_chunks, axis=0)

        # scatter attended rows over the baseline (top-k indices are unique).
        match = row_iota == idx                                     # (Lq, u)
        selected = jnp.max(match.astype(jnp.float32), axis=1, keepdims=True) > 0.5
        scatter_vals = jnp.dot(match.astype(jnp.bfloat16),
                               out_top.astype(jnp.bfloat16),
                               preferred_element_type=jnp.float32)  # (Lq, Dh)
        o_ref[0, h] = jnp.where(selected, scatter_vals, v_avg)


def prob_attention_pallas(q_top, k, v, idx_row, limit_col, pad_row, *, scale):
    B, H, u, Dh = q_top.shape
    Lk = k.shape[2]
    Lq = pad_row.shape[2]
    T = _pick_chunk(Lq)
    kernel = functools.partial(_prob_attn_kernel, H=H, u=u, Lq=Lq, Lk=Lk,
                               Dh=Dh, T=T, scale=scale)
    return pl.pallas_call(
        kernel,
        out_shape=jax.ShapeDtypeStruct((B, H, Lq, Dh), jnp.float32),
        grid=(B,),
        in_specs=[pl.BlockSpec((1, H, 1, u), lambda b: (b, 0, 0, 0)),
                  pl.BlockSpec((1, H, u, 1), lambda b: (b, 0, 0, 0)),
                  pl.BlockSpec((1, H, u, Dh), lambda b: (b, 0, 0, 0)),
                  pl.BlockSpec((1, H, Lk, Dh), lambda b: (b, 0, 0, 0)),
                  pl.BlockSpec((1, H, Lk, Dh), lambda b: (b, 0, 0, 0)),
                  pl.BlockSpec((1, 1, Lq), lambda b: (b, 0, 0))],
        out_specs=pl.BlockSpec((1, H, Lq, Dh), lambda b: (b, 0, 0, 0)),
        compiler_params=pltpu.CompilerParams(dimension_semantics=("parallel",)),
    )(idx_row, limit_col, q_top, k, v, pad_row)


# -------------------------------- full forward ---------------------------------
def forward(params, queries, keys_in, values_in, padding_mask, sample_idx, *, H, alpha):
    B, Lq, D = queries.shape
    _, Lk, _ = keys_in.shape
    assert Lq == Lk, "ProbSparse with_mask path requires Lq == Lk"
    Dh = D // H
    scale = 1.0 / math.sqrt(D)   # module scales by 1/sqrt(hidden_dims)

    # projections (Pallas kernels; Q LayerNorm fused into the Q projection)
    proj_q = ln_linear_pallas(queries.reshape(B * Lq, D),
                              params["q_ln_w"], params["q_ln_b"],
                              params["Wq"], params["bq"]).reshape(B, Lq, D)
    proj_k = linear_pallas(keys_in.reshape(B * Lk, D), params["Wk"], params["bk"]).reshape(B, Lk, D)
    proj_v = linear_pallas(values_in.reshape(B * Lk, D), params["Wv"], params["bv"]).reshape(B, Lk, D)

    # TODO(synk): the head split/merge transposes could be folded into the
    # BlockSpec DMA (keep a (B, L, H, Dh) layout and stride the per-head
    # loads), but per-head strided sublane access is kept out of the kernel
    # here for lowering robustness; XLA does the (small) transposes instead.
    def split_heads(x, Lx):
        return x.reshape(B, Lx, H, Dh).transpose(0, 2, 1, 3)

    mh_q = split_heads(proj_q, Lq)
    mh_k = split_heads(proj_k, Lk)
    mh_v = split_heads(proj_v, Lk)

    # --- ProbSparse measurement (plain-JAX glue) ---
    # TODO(synk): random key sampling + top-k selection are data-dependent
    # gathers with no clean Pallas TPU equivalent; kept in JAX, feeding the
    # kernel via small VMEM index tensors.
    u_top = min(alpha * int(np.ceil(np.log(Lq))), Lq)
    K_sample = mh_k[:, :, sample_idx, :]                              # (B,H,Lq,Up,Dh)
    QK_sample = jnp.einsum('bhld,bhlsd->bhls', mh_q, K_sample)
    M = QK_sample.max(-1) - QK_sample.sum(-1) / Lk
    M_top = lax.top_k(M, u_top)[1].astype(jnp.int32)                  # (B,H,u)

    b_idx = jnp.arange(B)[:, None, None]
    h_idx = jnp.arange(H)[None, :, None]
    q_top = mh_q[b_idx, h_idx, M_top, :]                              # (B,H,u,Dh)

    # per-top-query key limit: causal bound if the query position is unpadded,
    # -1 (mask everything) otherwise  ->  vectorized mask build in-kernel.
    pad_at_idx = padding_mask[b_idx, M_top]                           # (B,H,u)
    limit_col = jnp.where(pad_at_idx > 0, M_top, -1).astype(jnp.int32)[..., None]  # (B,H,u,1)
    idx_row = M_top[:, :, None, :]                                    # (B,H,1,u)

    out_heads = prob_attention_pallas(
        q_top.astype(jnp.bfloat16),
        mh_k.astype(jnp.bfloat16),
        mh_v.astype(jnp.bfloat16),
        idx_row, limit_col,
        padding_mask.reshape(B, 1, Lq).astype(jnp.float32),
        scale=scale)                                                  # (B,H,Lq,Dh)

    merged = out_heads.transpose(0, 2, 1, 3).reshape(B, Lq, H * Dh)
    out = linear_ln_pallas(merged.reshape(B * Lq, H * Dh),
                           params["Wf"], params["bf"],
                           params["f_ln_w"], params["f_ln_b"]).reshape(B, Lq, D)
    return out, (mh_q, mh_k, mh_v, M_top)


# ------------------------- pure-JAX f32 reference (mirrors torch) ---------------
def reference_tail(params, mh_q, mh_k, mh_v, M_top, padding_mask, scale):
    B, H, Lq, Dh = mh_q.shape
    Lk = mh_v.shape[2]
    b_idx = jnp.arange(B)[:, None, None]
    h_idx = jnp.arange(H)[None, :, None]
    q_top = mh_q[b_idx, h_idx, M_top, :]
    scores = jnp.einsum('bhud,bhkd->bhuk', q_top, mh_k) * scale
    tri = jnp.triu(jnp.ones((Lq, Lk), dtype=bool), 1)
    allowed = (~tri)[M_top]
    pad_ind = padding_mask[b_idx, M_top] > 0
    mask = allowed & pad_ind[..., None]
    scores = jnp.where(mask, scores, NEG_FILL)
    attn = jax.nn.softmax(scores, axis=-1)
    ctx = jnp.einsum('bhuk,bhkd->bhud', attn, mh_v)
    v_avg = jnp.cumsum(mh_v, axis=2)
    den = jnp.cumsum(padding_mask, axis=-1)[:, None, :, None] + EPS_ATTN
    v_avg = v_avg / den
    v_out = v_avg.at[b_idx, h_idx, M_top, :].set(ctx)
    merged = v_out.transpose(0, 2, 1, 3).reshape(B, Lq, H * Dh)
    out = merged @ params["Wf"] + params["bf"]
    mu = out.mean(-1, keepdims=True)
    var = ((out - mu) ** 2).mean(-1, keepdims=True)
    out = (out - mu) / jnp.sqrt(var + EPS_LN)
    return params["f_ln_w"] * out + params["f_ln_b"]


if __name__ == "__main__":
    B, L, D, H = 2, 16, 32, 2       # hidden_dims=32, lmsal_heads=2 -> head_size=16
    alpha = 2
    key = jax.random.PRNGKey(0)
    ks = jax.random.split(key, 16)

    queries = jax.random.normal(ks[0], (B, L, D), jnp.float32)
    keys_in = jax.random.normal(ks[1], (B, L, D), jnp.float32)
    values_in = jax.random.normal(ks[2], (B, L, D), jnp.float32)

    pad = np.ones((B, L), np.float32)
    pad[1, 13:] = 0.0               # trailing padding on the second batch element
    padding_mask = jnp.asarray(pad)

    def lin_init(k, din, dout):
        lim = 1.0 / math.sqrt(din)
        kw, kb = jax.random.split(k)
        w_t = jax.random.uniform(kw, (din, dout), jnp.float32, -lim, lim)
        b = jax.random.uniform(kb, (dout,), jnp.float32, -lim, lim)
        return w_t, b

    Wq, bq = lin_init(ks[3], D, D)
    Wk, bk = lin_init(ks[4], D, D)
    Wv, bv = lin_init(ks[5], D, D)
    Wf, bf = lin_init(ks[6], D, D)
    params = {
        "Wq": Wq, "bq": bq, "Wk": Wk, "bk": bk, "Wv": Wv, "bv": bv,
        "Wf": Wf, "bf": bf,
        "q_ln_w": 1.0 + 0.05 * jax.random.normal(ks[7], (D,), jnp.float32),
        "q_ln_b": 0.05 * jax.random.normal(ks[8], (D,), jnp.float32),
        "f_ln_w": 1.0 + 0.05 * jax.random.normal(ks[9], (D,), jnp.float32),
        "f_ln_b": 0.05 * jax.random.normal(ks[10], (D,), jnp.float32),
    }

    # deterministic stand-in for torch.randint(Lk, (Lq, sample_k))
    U_part = min(alpha * int(np.ceil(np.log(L))), L)
    sample_idx = jax.random.randint(ks[11], (L, U_part), 0, L)

    out, (mh_q, mh_k, mh_v, M_top) = forward(
        params, queries, keys_in, values_in, padding_mask, sample_idx,
        H=H, alpha=alpha)
    out = jax.block_until_ready(out)

    ref = reference_tail(params, mh_q, mh_k, mh_v, M_top, padding_mask,
                         1.0 / math.sqrt(D))

    assert out.shape == (B, L, D)
    assert bool(jnp.all(jnp.isfinite(out)))
    # bf16 MXU operands + approximate EUP reciprocals in the kernels => compare
    # against the f32 reference with a correspondingly relaxed tolerance
    # (structural bugs would show up as O(1) differences).
    diff = out - ref
    rel_fro = float(jnp.sqrt(jnp.sum(diff * diff)) / jnp.sqrt(jnp.sum(ref * ref)))
    max_abs = float(jnp.max(jnp.abs(diff)))
    assert rel_fro < 7e-2 and max_abs < 2.5e-1, \
        f"mismatch vs reference: rel_fro={rel_fro:.3e} max_abs={max_abs:.3e}"
    print("KERNEL_OK")
</pallas_src>

<mosaic_0001>
module attributes {stable_mosaic.version = 11 : i64} {
  func.func @_ln_linear_kernel(%arg0: i32, %arg1: memref<32x32xf32, #tpu.memory_space<vmem>>, %arg2: memref<1x32xf32, #tpu.memory_space<vmem>>, %arg3: memref<1x32xf32, #tpu.memory_space<vmem>>, %arg4: memref<32x32xbf16, #tpu.memory_space<vmem>>, %arg5: memref<1x32xf32, #tpu.memory_space<vmem>>, %arg6: memref<32x32xf32, #tpu.memory_space<vmem>>) attributes {dimension_semantics = [#tpu.dimension_semantics<parallel>], iteration_bounds = array<i64: 1>, scalar_prefetch = 0 : i64, scratch_operands = 0 : i64, tpu.core_type = #tpu.core_type<tc>, window_params = [{transform_indices = @transform_0, window_bounds = array<i64: 32, 32>}, {pipeline_mode = #tpu.pipeline_mode<synchronous>, transform_indices = @transform_1, window_bounds = array<i64: 1, 32>}, {pipeline_mode = #tpu.pipeline_mode<synchronous>, transform_indices = @transform_2, window_bounds = array<i64: 1, 32>}, {pipeline_mode = #tpu.pipeline_mode<synchronous>, transform_indices = @transform_3, window_bounds = array<i64: 32, 32>}, {pipeline_mode = #tpu.pipeline_mode<synchronous>, transform_indices = @transform_4, window_bounds = array<i64: 1, 32>}, {transform_indices = @transform_5, window_bounds = array<i64: 32, 32>}]} {
    %c0 = arith.constant 0 : index
    %c0_0 = arith.constant 0 : index
    %0 = vector.load %arg1[%c0, %c0_0] : memref<32x32xf32, #tpu.memory_space<vmem>>, vector<32x32xf32>
    %cst = arith.constant dense<0.000000e+00> : vector<32xf32>
    %1 = vector.multi_reduction <add>, %0, %cst [1] : vector<32x32xf32> to vector<32xf32>
    %2 = vector.shape_cast %1 : vector<32xf32> to vector<32x1xf32>
    %cst_1 = arith.constant 3.200000e+01 : f32
    %3 = vector.broadcast %cst_1 : f32 to vector<32x1xf32>
    %4 = arith.divf %2, %3 : vector<32x1xf32>
    %5 = vector.broadcast %4 : vector<32x1xf32> to vector<32x32xf32>
    %6 = arith.subf %0, %5 : vector<32x32xf32>
    %7 = arith.mulf %6, %6 : vector<32x32xf32>
    %cst_2 = arith.constant dense<0.000000e+00> : vector<32xf32>
    %8 = vector.multi_reduction <add>, %7, %cst_2 [1] : vector<32x32xf32> to vector<32xf32>
    %9 = vector.shape_cast %8 : vector<32xf32> to vector<32x1xf32>
    %cst_3 = arith.constant 3.200000e+01 : f32
    %10 = vector.broadcast %cst_3 : f32 to vector<32x1xf32>
    %11 = arith.divf %9, %10 : vector<32x1xf32>
    %c0_4 = arith.constant 0 : index
    %c0_5 = arith.constant 0 : index
    %12 = vector.load %arg2[%c0_4, %c0_5] : memref<1x32xf32, #tpu.memory_space<vmem>>, vector<1x32xf32>
    %cst_6 = arith.constant 9.99999993E-9 : f32
    %13 = vector.broadcast %cst_6 : f32 to vector<32x1xf32>
    %14 = arith.addf %11, %13 : vector<32x1xf32>
    %15 = math.rsqrt %14 : vector<32x1xf32>
    %16 = vector.broadcast %15 : vector<32x1xf32> to vector<32x32xf32>
    %17 = arith.mulf %6, %16 : vector<32x32xf32>
    %18 = vector.broadcast %12 : vector<1x32xf32> to vector<32x32xf32>
    %19 = arith.mulf %18, %17 : vector<32x32xf32>
    %c0_7 = arith.constant 0 : index
    %c0_8 = arith.constant 0 : index
    %20 = vector.load %arg3[%c0_7, %c0_8] : memref<1x32xf32, #tpu.memory_space<vmem>>, vector<1x32xf32>
    %21 = vector.broadcast %20 : vector<1x32xf32> to vector<32x32xf32>
    %22 = arith.addf %19, %21 : vector<32x32xf32>
    %23 = arith.truncf %22 : vector<32x32xf32> to vector<32x32xbf16>
    %c0_9 = arith.constant 0 : index
    %c0_10 = arith.constant 0 : index
    %24 = vector.load %arg4[%c0_9, %c0_10] : memref<32x32xbf16, #tpu.memory_space<vmem>>, vector<32x32xbf16>
    %cst_11 = arith.constant dense<0.000000e+00> : vector<32x32xf32>
    %25 = tpu.matmul %23, %24, %cst_11 {dimension_numbers = #tpu.dot_dimension_numbers<[1], [0], [0], [1], [0, 0, 1, 1], [], []>} : vector<32x32xbf16>, vector<32x32xbf16>, vector<32x32xf32> -> vector<32x32xf32>
    %c0_12 = arith.constant 0 : index
    %c0_13 = arith.constant 0 : index
    %26 = vector.load %arg5[%c0_12, %c0_13] : memref<1x32xf32, #tpu.memory_space<vmem>>, vector<1x32xf32>
    %27 = vector.broadcast %26 : vector<1x32xf32> to vector<32x32xf32>
    %28 = arith.addf %25, %27 : vector<32x32xf32>
    %c0_14 = arith.constant 0 : index
    %c0_15 = arith.constant 0 : index
    %29 = vector.load %arg6[%c0_14, %c0_15] : memref<32x32xf32, #tpu.memory_space<vmem>>, vector<32x32xf32>
    tpu.vector_store %arg6[%c0_14, %c0_15], %28 {strides = array<i32>} : memref<32x32xf32, #tpu.memory_space<vmem>>, vector<32x32xf32>,
    return
  }
  func.func @transform_0(%arg0: i32) -> (i32, i32) {
    %c0_i32 = arith.constant 0 : i32
    %c0_i32_0 = arith.constant 0 : i32
    return %arg0, %c0_i32 : i32, i32
  }
  func.func @transform_1(%arg0: i32) -> (i32, i32) {
    %c0_i32 = arith.constant 0 : i32
    %c0_i32_0 = arith.constant 0 : i32
    %c0_i32_1 = arith.constant 0 : i32
    return %c0_i32, %c0_i32_0 : i32, i32
  }
  func.func @transform_2(%arg0: i32) -> (i32, i32) {
    %c0_i32 = arith.constant 0 : i32
    %c0_i32_0 = arith.constant 0 : i32
    %c0_i32_1 = arith.constant 0 : i32
    return %c0_i32, %c0_i32_0 : i32, i32
  }
  func.func @transform_3(%arg0: i32) -> (i32, i32) {
    %c0_i32 = arith.constant 0 : i32
    %c0_i32_0 = arith.constant 0 : i32
    %c0_i32_1 = arith.constant 0 : i32
    return %c0_i32, %c0_i32_0 : i32, i32
  }
  func.func @transform_4(%arg0: i32) -> (i32, i32) {
    %c0_i32 = arith.constant 0 : i32
    %c0_i32_0 = arith.constant 0 : i32
    %c0_i32_1 = arith.constant 0 : i32
    return %c0_i32, %c0_i32_0 : i32, i32
  }
  func.func @transform_5(%arg0: i32) -> (i32, i32) {
    %c0_i32 = arith.constant 0 : i32
    %c0_i32_0 = arith.constant 0 : i32
    return %arg0, %c0_i32 : i32, i32
  }
}

</mosaic_0001>

<llo_original>
// kernel: tpu_custom_call.1
$region0: #{tpu_custom_call.1}
  #allocation0 [shape = 'u32[]', space=smem, size = 0x4, offset = 0x4, fixed_abs, tag = 'smem constant byte address 0x4 - core index']
  #allocation1 [shape = 'u32[144,128]{1,0:T(1,128)}', space=vmem, size = 0x12000, scoped, tag = 'internal scratch']
  %s0 = inlined_call_operand.hbm [shape: f32[32,32], index: 0, kind: input, shape index: {}]
  %s1 = inlined_call_operand.vmem [shape: f32[1,32], index: 1, kind: input, shape index: {}]
  %s2 = inlined_call_operand.vmem [shape: f32[1,32], index: 2, kind: input, shape index: {}]
  %s3 = inlined_call_operand.hbm [shape: bf16[32,32], index: 3, kind: input, shape index: {}]
  %s4 = inlined_call_operand.vmem [shape: f32[1,32], index: 4, kind: input, shape index: {}]
  %s5 = inlined_call_operand.hbm [shape: f32[32,32], index: 5, kind: output, shape index: {}]
  %s6 = sld [smem:[#allocation0]]
  $region38: #{tpu_custom_call.1} parent=0
    _
  %s8 = ssub.s32 1, %s6
  %s9 = scalar_select 0, %s8, %s6
  $region1: #{tpu_custom_call.1} parent=0
    #allocation2 [shape = 'u8[16384]{0}', space=vmem, size = 0x4000, scoped, tag = 'input window, operand 0, single buffered']
    #allocation3 [shape = 's32[1]{0}', space=sflag, size = 0x4, scoped, tag = 'scoped memory for tpu_custom_call.1']
    #allocation4 [shape = 's32[1]{0}', space=sflag, size = 0x4, scoped, tag = 'scoped memory for tpu_custom_call.1']
    #allocation5 [shape = 'u8[8192]{0}', space=vmem, size = 0x2000, scoped, tag = 'input window, operand 3, single buffered']
    #allocation6 [shape = 's32[1]{0}', space=sflag, size = 0x4, scoped, tag = 'scoped memory for tpu_custom_call.1']
    #allocation7 [shape = 'u8[16384]{0}', space=vmem, size = 0x4000, scoped, tag = 'output window, operand 0, single buffered']
    %10 = vsyncpa [#allocation3], 0
    %11 = vsyncpa [#allocation6], 0
    %12 = vsyncpa [#allocation4], 0
    // Predicated region
    $region2: #{tpu_custom_call.1} parent=1 // pred_check
      _
    $region3: #{tpu_custom_call.1} parent=1 // pred_check_branch
      %14 = sbr.rel (0) target = $region5
    $region4: #{tpu_custom_call.1} parent=1 // pred_region
      %s16 = ssub.s32 512, 512
      %17 = vsyncadd [#allocation3], %s16
      %s18 = sshll.u32 [#allocation2], 4
      %s19 = int_to_ptr.vmem [resolvable:$true] %s18
      %24 = dma.hbm_to_vmem [thread:$0]  %s0, 512, %s19, [#allocation3], 128, 128, 8
    $region5: #{tpu_custom_call.1} parent=1 // pred_fallthru
      _
    // Predicated region
    $region6: #{tpu_custom_call.1} parent=1 // pred_check
      _
    $region7: #{tpu_custom_call.1} parent=1 // pred_check_branch
      %26 = sbr.rel (0) target = $region9
    $region8: #{tpu_custom_call.1} parent=1 // pred_region
      _
    $region9: #{tpu_custom_call.1} parent=1 // pred_fallthru
      _
    // Predicated region
    $region10: #{tpu_custom_call.1} parent=1 // pred_check
      _
    $region11: #{tpu_custom_call.1} parent=1 // pred_check_branch
      %28 = sbr.rel (0) target = $region13
    $region12: #{tpu_custom_call.1} parent=1 // pred_region
      _
    $region13: #{tpu_custom_call.1} parent=1 // pred_fallthru
      _
    // Predicated region
    $region14: #{tpu_custom_call.1} parent=1 // pred_check
      _
    $region15: #{tpu_custom_call.1} parent=1 // pred_check_branch
      %30 = sbr.rel (0) target = $region17
    $region16: #{tpu_custom_call.1} parent=1 // pred_region
      %s32 = ssub.s32 256, 256
      %33 = vsyncadd [#allocation6], %s32
      %s34 = sshll.u32 [#allocation5], 4
      %s35 = int_to_ptr.vmem [resolvable:$true] %s34
      %40 = dma.hbm_to_vmem [thread:$0]  %s3, 256, %s35, [#allocation6], 64, 64, 4
    $region17: #{tpu_custom_call.1} parent=1 // pred_fallthru
      _
    // Predicated region
    $region18: #{tpu_custom_call.1} parent=1 // pred_check
      _
    $region19: #{tpu_custom_call.1} parent=1 // pred_check_branch
      %42 = sbr.rel (0) target = $region21
    $region20: #{tpu_custom_call.1} parent=1 // pred_region
      _
    $region21: #{tpu_custom_call.1} parent=1 // pred_fallthru
      _
    // Predicated region
    $region22: #{tpu_custom_call.1} parent=1 // pred_check
      _
    $region23: #{tpu_custom_call.1} parent=1 // pred_check_branch
      %44 = sbr.rel (0) target = $region25
    $region24: #{tpu_custom_call.1} parent=1 // pred_region
      %45 = dma.done [#allocation3], 512
    $region25: #{tpu_custom_call.1} parent=1 // pred_fallthru
      _
    // Predicated region
    $region26: #{tpu_custom_call.1} parent=1 // pred_check
      _
    $region27: #{tpu_custom_call.1} parent=1 // pred_check_branch
      %47 = sbr.rel (0) target = $region29
    $region28: #{tpu_custom_call.1} parent=1 // pred_region
      %48 = dma.done [#allocation6], 256
    $region29: #{tpu_custom_call.1} parent=1 // pred_fallthru
      _
    %v50 = vld [vmem:[#allocation2] sm:$0xff]
    %v51 = vld [vmem:[#allocation2 + $0x8] sm:$0xff]
    %v52 = vld [vmem:[#allocation2 + $0x10] sm:$0xff]
    %v53 = vld [vmem:[#allocation2 + $0x18] sm:$0xff]
    %vm54 = vcmask 261120
    %v55 = vsel %vm54, %v50, 0.0
    %56 = vadd.xlane.f32.xlu0 %v55
    %v57 = vpop.xlane.xlu0 %56
    %v58 = vsel %vm54, %v51, 0.0
    %59 = vadd.xlane.f32.xlu0 %v58
    %v60 = vpop.xlane.xlu0 %59
    %v61 = vsel %vm54, %v52, 0.0
    %62 = vadd.xlane.f32.xlu0 %v61
    %v63 = vpop.xlane.xlu0 %62
    %v64 = vsel %vm54, %v53, 0.0
    %65 = vadd.xlane.f32.xlu0 %v64
    %v66 = vpop.xlane.xlu0 %65
    %v67 = vrcp.pop 32.0
    %v68 = vmul.f32 %v57, %v67
    %v69 = vmul.f32 %v60, %v67
    %v70 = vmul.f32 %v63, %v67
    %v71 = vmul.f32 %v66, %v67
    %v72 = vsub.f32 %v50, %v68
    %v73 = vsub.f32 %v51, %v69
    %v74 = vsub.f32 %v52, %v70
    %v75 = vsub.f32 %v53, %v71
    %v76 = vmul.f32 %v72, %v72
    %v77 = vmul.f32 %v73, %v73
    %v78 = vmul.f32 %v74, %v74
    %v79 = vmul.f32 %v75, %v75
    %v80 = vsel %vm54, %v76, 0.0
    %81 = vadd.xlane.f32.xlu0 %v80
    %v82 = vpop.xlane.xlu0 %81
    %v83 = vsel %vm54, %v77, 0.0
    %84 = vadd.xlane.f32.xlu0 %v83
    %v85 = vpop.xlane.xlu0 %84
    %v86 = vsel %vm54, %v78, 0.0
    %87 = vadd.xlane.f32.xlu0 %v86
    %v88 = vpop.xlane.xlu0 %87
    %v89 = vsel %vm54, %v79, 0.0
    %90 = vadd.xlane.f32.xlu0 %v89
    %v91 = vpop.xlane.xlu0 %90
    %v92 = vmul.f32 %v82, %v67
    %v93 = vmul.f32 %v85, %v67
    %v94 = vmul.f32 %v88, %v67
    %v95 = vmul.f32 %v91, %v67
    %v96 = vld [vmem:[%s1] sm:$0x1]
    %v97 = vadd.f32 %v92, 1e-08
    %v98 = vadd.f32 %v93, 1e-08
    %v99 = vadd.f32 %v94, 1e-08
    %v100 = vadd.f32 %v95, 1e-08
    %v101 = vrsqrt.pop %v97
    %v102 = vrsqrt.pop %v98
    %v103 = vrsqrt.pop %v99
    %v104 = vrsqrt.pop %v100
    %v105 = vmul.f32 %v72, %v101
    %v106 = vmul.f32 %v73, %v102
    %v107 = vmul.f32 %v74, %v103
    %v108 = vmul.f32 %v75, %v104
    %v110 = vlaneseq
    %v111 = vshrl.u32 %v110, 7
    %v112 = vsub.s32 0, %v111
    %v113 = vrot.slane %v96, %v112
    %v115 = vmul.f32 %v113, %v105
    %v116 = vmul.f32 %v113, %v106
    %v117 = vmul.f32 %v113, %v107
    %v118 = vmul.f32 %v113, %v108
    %v119 = vld [vmem:[%s2] sm:$0x1]
    %v121 = vlaneseq
    %v122 = vshrl.u32 %v121, 7
    %v123 = vsub.s32 0, %v122
    %v124 = vrot.slane %v119, %v123
    %v126 = vadd.f32 %v115, %v124
    %v127 = vadd.f32 %v116, %v124
    %v128 = vadd.f32 %v117, %v124
    %v129 = vadd.f32 %v118, %v124
    %v130 = vpack.c.bf16 %v127, %v126
    %v131 = vpack.c.bf16 %v129, %v128
    %v132 = vld [vmem:[#allocation5] sm:$0xf]
    %v133 = vld [vmem:[#allocation5 + $0x4] sm:$0xf]
    %v134 = vld [vmem:[#allocation5 + $0x8] sm:$0xf]
    %v135 = vld [vmem:[#allocation5 + $0xc] sm:$0xf]
    %v136 = vld [vmem:[%s4] sm:$0x1]
    %v138 = vlaneseq
    %v139 = vshrl.u32 %v138, 7
    %v140 = vsub.s32 0, %v139
    %v141 = vrot.slane %v136, %v140
    %v147 = vunpack.c.l.b16 %v132
    %v148 = vunpack.c.l.b16 %v133
    %v149 = vunpack.c.l.b16 %v134
    %v150 = vunpack.c.l.b16 %v135
    %v151 = vpack.c.b16 %v148, %v147
    %v152 = vpack.c.b16 %v150, %v149
    %v156 = vsel %vm54, %v130, 0
    %v159 = vsel %vm54, %v131, 0
    %161 = vmatprep.subr.bf16.mxu0 0
    %162 = vmatpush1.bf16.msra.mxu0 %v151
    %163 = vmatprep.subr.bf16.mxu0 0
    %164 = vmatpush1.bf16.msra.mxu0 %v152
    %165 = vmatprep.subr.bf16.mxu0 0
    %166 = vmatpush1.bf16.msra.mxu0 0
    %167 = vmatprep.subr.bf16.mxu0 0
    %168 = vmatpush1.bf16.msra.mxu0 0
    %169 = vmatprep.subr.bf16.mxu0 0
    %170 = vmatpush1.bf16.msra.mxu0 0
    %171 = vmatprep.subr.bf16.mxu0 0
    %172 = vmatpush1.bf16.msra.mxu0 0
    %173 = vmatprep.subr.bf16.mxu0 0
    %174 = vmatpush1.bf16.msra.mxu0 0
    %175 = vmatprep.subr.bf16.mxu0 0
    %176 = vmatpush1.bf16.msra.mxu0 0
    %177 = vmatprep.subr.bf16.mxu0 0
    %178 = vmatpush1.bf16.msra.mxu0 0
    %179 = vmatprep.subr.bf16.mxu0 0
    %180 = vmatpush1.bf16.msra.mxu0 0
    %181 = vmatprep.subr.bf16.mxu0 0
    %182 = vmatpush1.bf16.msra.mxu0 0
    %183 = vmatprep.subr.bf16.mxu0 0
    %184 = vmatpush1.bf16.msra.mxu0 0
    %185 = vmatprep.subr.bf16.mxu0 0
    %186 = vmatpush1.bf16.msra.mxu0 0
    %187 = vmatprep.subr.bf16.mxu0 0
    %188 = vmatpush1.bf16.msra.mxu0 0
    %189 = vmatprep.subr.bf16.mxu0 0
    %190 = vmatpush1.bf16.msra.mxu0 0
    %191 = vmatprep.subr.bf16.mxu0 0
    %192 = vmatpush1.bf16.msra.mxu0 0
    %193 = vmatprep.mubr.bf16.mxu0 0
    %194 = vmatmul.mubr.bf16.gmra.mrb[0].mxu0 %v156
    %v195 = vpop.f32.mrb[0].mxu0
    %v196 = vadd.f32 %v141, %v195
    %v197 = vpop.f32.mrb[0].mxu0
    %v198 = vpop.f32.mrb[0].mxu0
    %v199 = vadd.f32 %v141, %v198
    %v200 = vpop.f32.mrb[0].mxu0
    %201 = vmatprep.mubr.bf16.mxu0 0
    %202 = vmatmul.mubr.bf16.gmra.mrb[0].mxu0 %v159
    %v203 = vpop.f32.mrb[0].mxu0
    %v204 = vadd.f32 %v141, %v203
    %v205 = vpop.f32.mrb[0].mxu0
    %v206 = vpop.f32.mrb[0].mxu0
    %v207 = vadd.f32 %v141, %v206
    %v208 = vpop.f32.mrb[0].mxu0
    %209 = vdwg.mxu0
    %210 = vst.msk [vmem:[#allocation7] sm:$0xff] %vm54, %v196
    %211 = vst.msk [vmem:[#allocation7 + $0x8] sm:$0xff] %vm54, %v199
    %212 = vst.msk [vmem:[#allocation7 + $0x10] sm:$0xff] %vm54, %v204
    %213 = vst.msk [vmem:[#allocation7 + $0x18] sm:$0xff] %vm54, %v207
    // Predicated region
    $region30: #{tpu_custom_call.1} parent=1 // pred_check
      _
    $region31: #{tpu_custom_call.1} parent=1 // pred_check_branch
      %215 = sbr.rel (0) target = $region33
    $region32: #{tpu_custom_call.1} parent=1 // pred_region
      %s217 = ssub.s32 512, 512
      %218 = vsyncadd [#allocation4], %s217
      %s219 = sshll.u32 [#allocation7], 4
      %s220 = int_to_ptr.vmem [resolvable:$true] %s219
      %225 = dma.vmem_to_hbm [thread:$0]  %s220, 512, %s5, [#allocation4], 128, 128, 8
    $region33: #{tpu_custom_call.1} parent=1 // pred_fallthru
      _
    // Predicated region
    $region34: #{tpu_custom_call.1} parent=1 // pred_check
      _
    $region35: #{tpu_custom_call.1} parent=1 // pred_check_branch
      %227 = sbr.rel (0) target = $region37
    $region36: #{tpu_custom_call.1} parent=1 // pred_region
      %228 = dma.done [#allocation4], 512
    $region37: #{tpu_custom_call.1} parent=1 // pred_fallthru
      _
    %229 = vsyncpa [#allocation3], 1
    %230 = vsyncpa [#allocation6], 1
    %231 = vsyncpa [#allocation4], 1

</llo_original>
